<compile_context>
chip_gen: v6e
topology: v6e:2x2x1
jax: 0.10.0
libtpu: 0.0.40
codegen_flags: <defaults>
</compile_context>

<pallas_src>
import numpy as np
import jax
import jax.numpy as jnp
from jax import lax
from jax.experimental import pallas as pl
from jax.experimental.pallas import tpu as pltpu

try:  # C implementation if available; falls back to the pure-Python JV solver below.
    from scipy.optimize import linear_sum_assignment as _scipy_lsa
except Exception:  # pragma: no cover
    _scipy_lsa = None


# --------------------------------------------------------------------------------------
# Trace-time hardware queries
# --------------------------------------------------------------------------------------
def _num_tensorcores():
    try:
        kind = str(jax.devices()[0].device_kind).lower()
        if "v7" in kind:          # v7x: 2 TensorCores per chip
            return 2
    except Exception:
        pass
    return 1                      # v5e / v6e: single TensorCore


def _vmem_limit_bytes():
    # Scoped-VMEM default is only 16 MiB (v5e) / 32 MiB (v6e/v7x); raise it so the
    # fused-batch block keeps lowering at larger shapes, capped below physical
    # capacity (64 MiB on v7x, 128 MiB on v5e/v6e).
    try:
        phys = int(pltpu.get_tpu_info().vmem_capacity_bytes)
    except Exception:
        phys = 64 * 1024 * 1024
    return min(96 * 1024 * 1024, (phys * 3) // 4)


def _batch_chunks(B):
    # 2-way "parallel" batch split only when there are >=2 TensorCores (v7x) and
    # enough batches; on single-TC chips it is a sequential loop + duplicated DMA.
    return 2 if (_num_tensorcores() >= 2 and B % 2 == 0 and B >= 4) else 1


# --------------------------------------------------------------------------------------
# Kernel bodies
# --------------------------------------------------------------------------------------
def _normalize(x):
    # rsqrt (EUP slot) + multiply instead of sqrt + divide (VALU). The 1e-24 clamp
    # guards exactly-zero rows (PyTorch would propagate inf/nan into the cost there).
    return x * lax.rsqrt(jnp.maximum(jnp.sum(x * x, axis=-1, keepdims=True), 1e-24))


def _cost_block(s, q):
    # Batched matmul contracting the last axis of both operands (no explicit q.T /
    # cross-lane transpose). bf16 operands feed the MXU at native rate; f32 accumulate.
    cos = jnp.einsum(
        "bnd,bmd->bnm",
        _normalize(s).astype(jnp.bfloat16),
        _normalize(q).astype(jnp.bfloat16),
        preferred_element_type=jnp.float32,
    )
    return 1.0 - cos


def _cost_kernel(s_ref, q_ref, c_ref):
    s = s_ref[...].astype(jnp.float32)                                   # (Bc, N, D)
    q = q_ref[...].astype(jnp.float32)                                   # (Bc, N, D)
    c_ref[...] = _cost_block(s, q).astype(c_ref.dtype)


def _fused_kernel(s_ref, q_ref, w1_ref, w2_ref, c_ref, so_ref, qo_ref):
    Bc, N, D = s_ref.shape
    s = s_ref[...].astype(jnp.float32)                                   # (Bc, N, D)
    q = q_ref[...].astype(jnp.float32)                                   # (Bc, N, D)

    # ---- cosine-distance cost matrices ----
    c_ref[...] = _cost_block(s, q).astype(c_ref.dtype)

    # ---- residual MLP  x + relu(relu(x @ W1) @ W2)  on the UN-permuted rows ----
    # Row-wise, so it commutes with the later row gather; runs in the same launch and
    # fully overlaps / precedes the host Hungarian.
    w1 = w1_ref[...].astype(jnp.bfloat16)                                # (D, Hp)
    w2 = w2_ref[...].astype(jnp.bfloat16)                                # (Hp, D)

    def mlp(x):
        x2 = x.reshape(Bc * N, D)      # leading-dim collapse only; lane dim untouched
        h = jnp.maximum(
            jnp.dot(x2.astype(jnp.bfloat16), w1, preferred_element_type=jnp.float32),
            0.0)                                                          # (Bc*N, Hp)
        y = jnp.maximum(
            jnp.dot(h.astype(jnp.bfloat16), w2, preferred_element_type=jnp.float32),
            0.0)                                                          # (Bc*N, D)
        return (x2 + y).reshape(Bc, N, D)

    so_ref[...] = mlp(s).astype(so_ref.dtype)
    qo_ref[...] = mlp(q).astype(qo_ref.dtype)


# --------------------------------------------------------------------------------------
# Pallas wrappers (jitted so each device-side path is a single dispatch)
# --------------------------------------------------------------------------------------
@jax.jit
def cost_matrices_pallas(support, query):
    B, N, D = support.shape
    nchunks = _batch_chunks(B)
    Bc = B // nchunks
    return pl.pallas_call(
        _cost_kernel,
        out_shape=jax.ShapeDtypeStruct((B, N, N), jnp.float32),
        grid=(nchunks,),
        in_specs=[
            pl.BlockSpec((Bc, N, D), lambda i: (i, 0, 0)),
            pl.BlockSpec((Bc, N, D), lambda i: (i, 0, 0)),
        ],
        out_specs=pl.BlockSpec((Bc, N, N), lambda i: (i, 0, 0)),
        compiler_params=pltpu.CompilerParams(
            dimension_semantics=("parallel",),
            vmem_limit_bytes=_vmem_limit_bytes()),
    )(support, query)


@jax.jit
def fused_cost_mlp_pallas(support, query, w1p, w2p):
    B, N, D = support.shape
    Hp = w1p.shape[1]
    nchunks = _batch_chunks(B)
    Bc = B // nchunks
    return pl.pallas_call(
        _fused_kernel,
        out_shape=(
            jax.ShapeDtypeStruct((B, N, N), jnp.float32),
            jax.ShapeDtypeStruct((B, N, D), support.dtype),
            jax.ShapeDtypeStruct((B, N, D), query.dtype),
        ),
        grid=(nchunks,),
        in_specs=[
            pl.BlockSpec((Bc, N, D), lambda i: (i, 0, 0)),
            pl.BlockSpec((Bc, N, D), lambda i: (i, 0, 0)),
            pl.BlockSpec((D, Hp), lambda i: (0, 0)),
            pl.BlockSpec((Hp, D), lambda i: (0, 0)),
        ],
        out_specs=(
            pl.BlockSpec((Bc, N, N), lambda i: (i, 0, 0)),
            pl.BlockSpec((Bc, N, D), lambda i: (i, 0, 0)),
            pl.BlockSpec((Bc, N, D), lambda i: (i, 0, 0)),
        ),
        compiler_params=pltpu.CompilerParams(
            dimension_semantics=("parallel",),
            vmem_limit_bytes=_vmem_limit_bytes()),
    )(support, query, w1p, w2p)


@jax.jit
def _gather_rows(x, idx):
    # torch.gather(x, 1, idx.unsqueeze(-1).repeat(1,1,D)) == take_along_axis w/ bcast.
    return jnp.take_along_axis(x, idx[..., None], axis=1)


# --------------------------------------------------------------------------------------
# Host-side Hungarian algorithm (Jonker-Volgenant, O(n^3)); used only if scipy missing.
# --------------------------------------------------------------------------------------
def _hungarian(cost):
    n = cost.shape[0]
    INF = float("inf")
    u = np.zeros(n + 1)
    v = np.zeros(n + 1)
    p = np.zeros(n + 1, dtype=np.int64)
    way = np.zeros(n + 1, dtype=np.int64)
    for i in range(1, n + 1):
        p[0] = i
        j0 = 0
        minv = np.full(n + 1, INF)
        used = np.zeros(n + 1, dtype=bool)
        while True:
            used[j0] = True
            i0 = p[j0]
            delta = INF
            j1 = -1
            for j in range(1, n + 1):
                if not used[j]:
                    cur = cost[i0 - 1, j - 1] - u[i0] - v[j]
                    if cur < minv[j]:
                        minv[j] = cur
                        way[j] = j0
                    if minv[j] < delta:
                        delta = minv[j]
                        j1 = j
            for j in range(n + 1):
                if used[j]:
                    u[p[j]] += delta
                    v[j] -= delta
                else:
                    minv[j] -= delta
            j0 = j1
            if p[j0] == 0:
                break
        while True:
            j1 = way[j0]
            p[j0] = p[j1]
            j0 = j1
            if j0 == 0:
                break
    col_of_row = np.zeros(n, dtype=np.int64)
    for j in range(1, n + 1):
        col_of_row[p[j] - 1] = j - 1
    return np.arange(n, dtype=np.int64), col_of_row


def _linear_sum_assignment(cost):
    if _scipy_lsa is not None:
        r, c = _scipy_lsa(cost)
        return np.asarray(r, dtype=np.int64), np.asarray(c, dtype=np.int64)
    return _hungarian(cost)


# --------------------------------------------------------------------------------------
# HungarianMatcher wrapper
# --------------------------------------------------------------------------------------
class HungarianMatcherPallas:
    def __init__(self, dim, learnable_matcher, key):
        self.learnable_matcher = learnable_matcher
        if learnable_matcher:
            k1, k2 = jax.random.split(key)
            H = dim // 2
            Hp = ((H + 127) // 128) * 128            # lane-dense hidden dim
            b1 = 1.0 / np.sqrt(dim)
            b2 = 1.0 / np.sqrt(H)
            # nn.Linear(dim, dim//2, bias=False) stored already transposed: (in, out),
            # zero-padded on the hidden axis (mathematically identical output).
            w1 = jax.random.uniform(k1, (dim, H), jnp.float32, -b1, b1)
            w2 = jax.random.uniform(k2, (H, dim), jnp.float32, -b2, b2)
            self.w1p = jnp.pad(w1, ((0, 0), (0, Hp - H)))
            self.w2p = jnp.pad(w2, ((0, Hp - H), (0, 0)))

    def _match_host(self, cost):
        # TODO(synk): linear_sum_assignment is data-dependent sequential control flow;
        # it runs on host, exactly like the PyTorch reference (which moves to CPU).
        cost_np = np.asarray(jax.device_get(cost))   # f32; no float64 re-copy
        sup_idx, qry_idx = [], []
        for cm in cost_np:
            r, c = _linear_sum_assignment(cm)
            sup_idx.append(r)
            qry_idx.append(c)
        return (jnp.asarray(np.stack(sup_idx), dtype=jnp.int32),
                jnp.asarray(np.stack(qry_idx), dtype=jnp.int32))

    def __call__(self, support, query):
        if self.learnable_matcher:
            # Single fused launch: cost matrices + residual MLP on un-permuted rows.
            cost, sup_mlp, qry_mlp = fused_cost_mlp_pallas(
                support, query, self.w1p, self.w2p)
            sup_idx, qry_idx = self._match_host(cost)
            # Row gather commutes with the row-wise MLP:
            # gather(x + linear(x)) == gather(x) + linear(gather(x)), as in the reference.
            return _gather_rows(sup_mlp, sup_idx), _gather_rows(qry_mlp, qry_idx)
        cost = cost_matrices_pallas(support, query)
        sup_idx, qry_idx = self._match_host(cost)
        return _gather_rows(support, sup_idx), _gather_rows(query, qry_idx)


# --------------------------------------------------------------------------------------
if __name__ == "__main__":
    B, N, D = 2, 8, 32  # batch, num_supervectors, num_dims
    key = jax.random.PRNGKey(0)
    k_sup, k_qry, k_params = jax.random.split(key, 3)

    support = jax.random.normal(k_sup, (B, N, D), dtype=jnp.float32)
    query = jax.random.normal(k_qry, (B, N, D), dtype=jnp.float32)

    matcher = HungarianMatcherPallas(dim=D, learnable_matcher=True, key=k_params)
    out_support, out_query = matcher(support, query)
    jax.block_until_ready(out_support)
    jax.block_until_ready(out_query)
    assert out_support.shape == (B, N, D) and out_query.shape == (B, N, D)

    # sanity check: fused kernel (cost + residual MLP on un-permuted rows) vs pure JAX.
    # bf16 MXU operands -> compare against the f32 reference with a loose tolerance.
    cost, sup_mlp, qry_mlp = fused_cost_mlp_pallas(support, query, matcher.w1p, matcher.w2p)
    jax.block_until_ready(cost)

    ns = jnp.linalg.norm(support, axis=-1, keepdims=True)
    nq = jnp.linalg.norm(query, axis=-1, keepdims=True)
    cost_ref = 1.0 - (support @ jnp.swapaxes(query, 1, 2)) / (ns * jnp.swapaxes(nq, 1, 2))
    assert np.allclose(np.asarray(cost), np.asarray(cost_ref), atol=5e-2, rtol=5e-2)

    def mlp_ref(x):
        return x + jnp.maximum(jnp.maximum(x @ matcher.w1p, 0.0) @ matcher.w2p, 0.0)

    assert np.allclose(np.asarray(sup_mlp), np.asarray(mlp_ref(support)), atol=5e-2, rtol=5e-2)
    assert np.allclose(np.asarray(qry_mlp), np.asarray(mlp_ref(query)), atol=5e-2, rtol=5e-2)

    # sanity check: cost-only kernel (non-learnable path) vs pure JAX.
    cost2 = jax.block_until_ready(cost_matrices_pallas(support, query))
    assert np.allclose(np.asarray(cost2), np.asarray(cost_ref), atol=5e-2, rtol=5e-2)

    matcher_nl = HungarianMatcherPallas(dim=D, learnable_matcher=False, key=k_params)
    s_nl, q_nl = matcher_nl(support, query)
    jax.block_until_ready(s_nl)
    assert s_nl.shape == (B, N, D) and q_nl.shape == (B, N, D)

    print("KERNEL_OK")
</pallas_src>

<mosaic_0001>
module attributes {stable_mosaic.version = 11 : i64} {
  func.func @_fused_kernel(%arg0: i32, %arg1: memref<2x8x32xf32, #tpu.memory_space<vmem>>, %arg2: memref<2x8x32xf32, #tpu.memory_space<vmem>>, %arg3: memref<32x128xf32, #tpu.memory_space<vmem>>, %arg4: memref<128x32xf32, #tpu.memory_space<vmem>>, %arg5: memref<2x8x8xf32, #tpu.memory_space<vmem>>, %arg6: memref<2x8x32xf32, #tpu.memory_space<vmem>>, %arg7: memref<2x8x32xf32, #tpu.memory_space<vmem>>) attributes {dimension_semantics = [#tpu.dimension_semantics<parallel>], iteration_bounds = array<i64: 1>, scalar_prefetch = 0 : i64, scratch_operands = 0 : i64, tpu.core_type = #tpu.core_type<tc>, window_params = [{transform_indices = @transform_0, window_bounds = array<i64: 2, 8, 32>}, {transform_indices = @transform_1, window_bounds = array<i64: 2, 8, 32>}, {pipeline_mode = #tpu.pipeline_mode<synchronous>, transform_indices = @transform_2, window_bounds = array<i64: 32, 128>}, {pipeline_mode = #tpu.pipeline_mode<synchronous>, transform_indices = @transform_3, window_bounds = array<i64: 128, 32>}, {transform_indices = @transform_4, window_bounds = array<i64: 2, 8, 8>}, {transform_indices = @transform_5, window_bounds = array<i64: 2, 8, 32>}, {transform_indices = @transform_6, window_bounds = array<i64: 2, 8, 32>}]} {
    %c0 = arith.constant 0 : index
    %c0_0 = arith.constant 0 : index
    %c0_1 = arith.constant 0 : index
    %0 = vector.load %arg1[%c0, %c0_0, %c0_1] : memref<2x8x32xf32, #tpu.memory_space<vmem>>, vector<2x8x32xf32>
    %c0_2 = arith.constant 0 : index
    %c0_3 = arith.constant 0 : index
    %c0_4 = arith.constant 0 : index
    %1 = vector.load %arg2[%c0_2, %c0_3, %c0_4] : memref<2x8x32xf32, #tpu.memory_space<vmem>>, vector<2x8x32xf32>
    %2 = arith.mulf %0, %0 : vector<2x8x32xf32>
    %cst = arith.constant dense<0.000000e+00> : vector<2x8xf32>
    %3 = vector.multi_reduction <add>, %2, %cst [2] : vector<2x8x32xf32> to vector<2x8xf32>
    %4 = vector.shape_cast %3 : vector<2x8xf32> to vector<2x8x1xf32>
    %cst_5 = arith.constant 1.000000e-24 : f32
    %5 = vector.broadcast %cst_5 : f32 to vector<2x8x1xf32>
    %6 = arith.maximumf %4, %5 : vector<2x8x1xf32>
    %7 = math.rsqrt %6 : vector<2x8x1xf32>
    %8 = vector.broadcast %7 : vector<2x8x1xf32> to vector<2x8x32xf32>
    %9 = arith.mulf %0, %8 : vector<2x8x32xf32>
    %10 = arith.truncf %9 : vector<2x8x32xf32> to vector<2x8x32xbf16>
    %11 = arith.mulf %1, %1 : vector<2x8x32xf32>
    %cst_6 = arith.constant dense<0.000000e+00> : vector<2x8xf32>
    %12 = vector.multi_reduction <add>, %11, %cst_6 [2] : vector<2x8x32xf32> to vector<2x8xf32>
    %13 = vector.shape_cast %12 : vector<2x8xf32> to vector<2x8x1xf32>
    %cst_7 = arith.constant 1.000000e-24 : f32
    %14 = vector.broadcast %cst_7 : f32 to vector<2x8x1xf32>
    %15 = arith.maximumf %13, %14 : vector<2x8x1xf32>
    %16 = math.rsqrt %15 : vector<2x8x1xf32>
    %17 = vector.broadcast %16 : vector<2x8x1xf32> to vector<2x8x32xf32>
    %18 = arith.mulf %1, %17 : vector<2x8x32xf32>
    %19 = arith.truncf %18 : vector<2x8x32xf32> to vector<2x8x32xbf16>
    "tpu.trace_start"() <{level = 10 : i32, message = "bnd,bmd->bnm"}> : () -> ()
    %cst_8 = arith.constant dense<0.000000e+00> : vector<2x8x8xf32>
    %20 = tpu.matmul %10, %19, %cst_8 {dimension_numbers = #tpu.dot_dimension_numbers<[2], [2], [1], [1], [0, 0, 0, 1, 1, 1], [0], [0]>} : vector<2x8x32xbf16>, vector<2x8x32xbf16>, vector<2x8x8xf32> -> vector<2x8x8xf32>
    "tpu.trace_stop"() : () -> ()
    %cst_9 = arith.constant 1.000000e+00 : f32
    %21 = vector.broadcast %cst_9 : f32 to vector<2x8x8xf32>
    %22 = arith.subf %21, %20 : vector<2x8x8xf32>
    %c0_10 = arith.constant 0 : index
    %c0_11 = arith.constant 0 : index
    %c0_12 = arith.constant 0 : index
    %23 = vector.load %arg5[%c0_10, %c0_11, %c0_12] : memref<2x8x8xf32, #tpu.memory_space<vmem>>, vector<2x8x8xf32>
    tpu.vector_store %arg5[%c0_10, %c0_11, %c0_12], %22 {strides = array<i32>} : memref<2x8x8xf32, #tpu.memory_space<vmem>>, vector<2x8x8xf32>,
    %c0_13 = arith.constant 0 : index
    %c0_14 = arith.constant 0 : index
    %24 = vector.load %arg3[%c0_13, %c0_14] : memref<32x128xf32, #tpu.memory_space<vmem>>, vector<32x128xf32>
    %25 = arith.truncf %24 : vector<32x128xf32> to vector<32x128xbf16>
    %c0_15 = arith.constant 0 : index
    %c0_16 = arith.constant 0 : index
    %26 = vector.load %arg4[%c0_15, %c0_16] : memref<128x32xf32, #tpu.memory_space<vmem>>, vector<128x32xf32>
    %27 = arith.truncf %26 : vector<128x32xf32> to vector<128x32xbf16>
    %28 = vector.shape_cast %0 : vector<2x8x32xf32> to vector<16x32xf32>
    %29 = arith.truncf %28 : vector<16x32xf32> to vector<16x32xbf16>
    %cst_17 = arith.constant dense<0.000000e+00> : vector<16x128xf32>
    %30 = tpu.matmul %29, %25, %cst_17 {dimension_numbers = #tpu.dot_dimension_numbers<[1], [0], [0], [1], [0, 0, 1, 1], [], []>} : vector<16x32xbf16>, vector<32x128xbf16>, vector<16x128xf32> -> vector<16x128xf32>
    %cst_18 = arith.constant 0.000000e+00 : f32
    %31 = vector.broadcast %cst_18 : f32 to vector<16x128xf32>
    %32 = arith.maximumf %30, %31 : vector<16x128xf32>
    %33 = arith.truncf %32 : vector<16x128xf32> to vector<16x128xbf16>
    %cst_19 = arith.constant dense<0.000000e+00> : vector<16x32xf32>
    %34 = tpu.matmul %33, %27, %cst_19 {dimension_numbers = #tpu.dot_dimension_numbers<[1], [0], [0], [1], [0, 0, 1, 1], [], []>} : vector<16x128xbf16>, vector<128x32xbf16>, vector<16x32xf32> -> vector<16x32xf32>
    %cst_20 = arith.constant 0.000000e+00 : f32
    %35 = vector.broadcast %cst_20 : f32 to vector<16x32xf32>
    %36 = arith.maximumf %34, %35 : vector<16x32xf32>
    %37 = arith.addf %28, %36 : vector<16x32xf32>
    %38 = vector.shape_cast %37 : vector<16x32xf32> to vector<2x8x32xf32>
    %c0_21 = arith.constant 0 : index
    %c0_22 = arith.constant 0 : index
    %c0_23 = arith.constant 0 : index
    %39 = vector.load %arg6[%c0_21, %c0_22, %c0_23] : memref<2x8x32xf32, #tpu.memory_space<vmem>>, vector<2x8x32xf32>
    tpu.vector_store %arg6[%c0_21, %c0_22, %c0_23], %38 {strides = array<i32>} : memref<2x8x32xf32, #tpu.memory_space<vmem>>, vector<2x8x32xf32>,
    %40 = vector.shape_cast %1 : vector<2x8x32xf32> to vector<16x32xf32>
    %41 = arith.truncf %40 : vector<16x32xf32> to vector<16x32xbf16>
    %cst_24 = arith.constant dense<0.000000e+00> : vector<16x128xf32>
    %42 = tpu.matmul %41, %25, %cst_24 {dimension_numbers = #tpu.dot_dimension_numbers<[1], [0], [0], [1], [0, 0, 1, 1], [], []>} : vector<16x32xbf16>, vector<32x128xbf16>, vector<16x128xf32> -> vector<16x128xf32>
    %cst_25 = arith.constant 0.000000e+00 : f32
    %43 = vector.broadcast %cst_25 : f32 to vector<16x128xf32>
    %44 = arith.maximumf %42, %43 : vector<16x128xf32>
    %45 = arith.truncf %44 : vector<16x128xf32> to vector<16x128xbf16>
    %cst_26 = arith.constant dense<0.000000e+00> : vector<16x32xf32>
    %46 = tpu.matmul %45, %27, %cst_26 {dimension_numbers = #tpu.dot_dimension_numbers<[1], [0], [0], [1], [0, 0, 1, 1], [], []>} : vector<16x128xbf16>, vector<128x32xbf16>, vector<16x32xf32> -> vector<16x32xf32>
    %cst_27 = arith.constant 0.000000e+00 : f32
    %47 = vector.broadcast %cst_27 : f32 to vector<16x32xf32>
    %48 = arith.maximumf %46, %47 : vector<16x32xf32>
    %49 = arith.addf %40, %48 : vector<16x32xf32>
    %50 = vector.shape_cast %49 : vector<16x32xf32> to vector<2x8x32xf32>
    %c0_28 = arith.constant 0 : index
    %c0_29 = arith.constant 0 : index
    %c0_30 = arith.constant 0 : index
    %51 = vector.load %arg7[%c0_28, %c0_29, %c0_30] : memref<2x8x32xf32, #tpu.memory_space<vmem>>, vector<2x8x32xf32>
    tpu.vector_store %arg7[%c0_28, %c0_29, %c0_30], %50 {strides = array<i32>} : memref<2x8x32xf32, #tpu.memory_space<vmem>>, vector<2x8x32xf32>,
    return
  }
  func.func @transform_0(%arg0: i32) -> (i32, i32, i32) {
    %c0_i32 = arith.constant 0 : i32
    %c0_i32_0 = arith.constant 0 : i32
    %c0_i32_1 = arith.constant 0 : i32
    return %arg0, %c0_i32, %c0_i32_0 : i32, i32, i32
  }
  func.func @transform_1(%arg0: i32) -> (i32, i32, i32) {
    %c0_i32 = arith.constant 0 : i32
    %c0_i32_0 = arith.constant 0 : i32
    %c0_i32_1 = arith.constant 0 : i32
    return %arg0, %c0_i32, %c0_i32_0 : i32, i32, i32
  }
  func.func @transform_2(%arg0: i32) -> (i32, i32) {
    %c0_i32 = arith.constant 0 : i32
    %c0_i32_0 = arith.constant 0 : i32
    %c0_i32_1 = arith.constant 0 : i32
    return %c0_i32, %c0_i32_0 : i32, i32
  }
  func.func @transform_3(%arg0: i32) -> (i32, i32) {
    %c0_i32 = arith.constant 0 : i32
    %c0_i32_0 = arith.constant 0 : i32
    %c0_i32_1 = arith.constant 0 : i32
    return %c0_i32, %c0_i32_0 : i32, i32
  }
  func.func @transform_4(%arg0: i32) -> (i32, i32, i32) {
    %c0_i32 = arith.constant 0 : i32
    %c0_i32_0 = arith.constant 0 : i32
    %c0_i32_1 = arith.constant 0 : i32
    return %arg0, %c0_i32, %c0_i32_0 : i32, i32, i32
  }
  func.func @transform_5(%arg0: i32) -> (i32, i32, i32) {
    %c0_i32 = arith.constant 0 : i32
    %c0_i32_0 = arith.constant 0 : i32
    %c0_i32_1 = arith.constant 0 : i32
    return %arg0, %c0_i32, %c0_i32_0 : i32, i32, i32
  }
  func.func @transform_6(%arg0: i32) -> (i32, i32, i32) {
    %c0_i32 = arith.constant 0 : i32
    %c0_i32_0 = arith.constant 0 : i32
    %c0_i32_1 = arith.constant 0 : i32
    return %arg0, %c0_i32, %c0_i32_0 : i32, i32, i32
  }
}

</mosaic_0001>

<llo_original>
// kernel: fused_cost_mlp_pallas.1
$region0: #{fused_cost_mlp_pallas.1}
  #allocation0 [shape = 'u32[]', space=smem, size = 0x4, offset = 0x4, fixed_abs, tag = 'smem constant byte address 0x4 - core index']
  #allocation1 [shape = 'u32[144,128]{1,0:T(1,128)}', space=vmem, size = 0x12000, scoped, tag = 'internal scratch']
  %s0 = inlined_call_operand.vmem [shape: f32[2,8,32], index: 0, kind: input, shape index: {}]
  %s1 = inlined_call_operand.vmem [shape: f32[2,8,32], index: 1, kind: input, shape index: {}]
  %s2 = inlined_call_operand.vmem [shape: f32[32,128], index: 2, kind: input, shape index: {}]
  %s3 = inlined_call_operand.vmem [shape: f32[128,32], index: 3, kind: input, shape index: {}]
  %s4 = inlined_call_operand.hbm [shape: f32[2,8,8], index: 4, kind: output, shape index: {0}]
  %s5 = inlined_call_operand.hbm [shape: f32[2,8,32], index: 5, kind: output, shape index: {1}]
  %s6 = inlined_call_operand.hbm [shape: f32[2,8,32], index: 6, kind: output, shape index: {2}]
  %7 = xla_tuple %s4, %s5, %s6
  %s8 = sld [smem:[#allocation0]]
  $region42: #{fused_cost_mlp_pallas.1} parent=0
    _
  %s10 = ssub.s32 1, %s8
  %s11 = scalar_select 0, %s10, %s8
  $region1: #{fused_cost_mlp_pallas.1} parent=0
    #allocation2 [shape = 'u8[8192]{0}', space=vmem, size = 0x2000, scoped, tag = 'output window, operand 0, single buffered']
    #allocation3 [shape = 's32[1]{0}', space=sflag, size = 0x4, scoped, tag = 'scoped memory for fused_cost_mlp_pallas.1']
    #allocation4 [shape = 'u8[8192]{0}', space=vmem, size = 0x2000, scoped, tag = 'output window, operand 1, single buffered']
    #allocation5 [shape = 's32[1]{0}', space=sflag, size = 0x4, scoped, tag = 'scoped memory for fused_cost_mlp_pallas.1']
    #allocation6 [shape = 'u8[8192]{0}', space=vmem, size = 0x2000, scoped, tag = 'output window, operand 2, single buffered']
    %12 = vsyncpa [#allocation3], 0
    %13 = vsyncpa [#allocation5], 0
    // Predicated region
    $region2: #{fused_cost_mlp_pallas.1} parent=1 // pred_check
      _
    $region3: #{fused_cost_mlp_pallas.1} parent=1 // pred_check_branch
      %15 = sbr.rel (0) target = $region5
    $region4: #{fused_cost_mlp_pallas.1} parent=1 // pred_region
      _
    $region5: #{fused_cost_mlp_pallas.1} parent=1 // pred_fallthru
      _
    // Predicated region
    $region6: #{fused_cost_mlp_pallas.1} parent=1 // pred_check
      _
    $region7: #{fused_cost_mlp_pallas.1} parent=1 // pred_check_branch
      %17 = sbr.rel (0) target = $region9
    $region8: #{fused_cost_mlp_pallas.1} parent=1 // pred_region
      _
    $region9: #{fused_cost_mlp_pallas.1} parent=1 // pred_fallthru
      _
    // Predicated region
    $region10: #{fused_cost_mlp_pallas.1} parent=1 // pred_check
      _
    $region11: #{fused_cost_mlp_pallas.1} parent=1 // pred_check_branch
      %19 = sbr.rel (0) target = $region13
    $region12: #{fused_cost_mlp_pallas.1} parent=1 // pred_region
      _
    $region13: #{fused_cost_mlp_pallas.1} parent=1 // pred_fallthru
      _
    // Predicated region
    $region14: #{fused_cost_mlp_pallas.1} parent=1 // pred_check
      _
    $region15: #{fused_cost_mlp_pallas.1} parent=1 // pred_check_branch
      %21 = sbr.rel (0) target = $region17
    $region16: #{fused_cost_mlp_pallas.1} parent=1 // pred_region
      _
    $region17: #{fused_cost_mlp_pallas.1} parent=1 // pred_fallthru
      _
    %v23 = vld [vmem:[%s0] sm:$0xff]
    %v24 = vld [vmem:[%s0 + $0x8] sm:$0xff]
    %v25 = vld [vmem:[%s1] sm:$0xff]
    %v26 = vld [vmem:[%s1 + $0x8] sm:$0xff]
    %v27 = vmul.f32 %v23, %v23
    %v28 = vmul.f32 %v24, %v24
    %vm29 = vcmask 261120
    %v30 = vsel %vm29, %v27, 0.0
    %31 = vadd.xlane.f32.xlu0 %v30
    %v32 = vpop.xlane.xlu0 %31
    %v33 = vsel %vm29, %v28, 0.0
    %34 = vadd.xlane.f32.xlu0 %v33
    %v35 = vpop.xlane.xlu0 %34
    %v36 = vmax.f32 %v32, 1e-24
    %v37 = vmax.f32 %v35, 1e-24
    %v38 = vrsqrt.pop %v36
    %v39 = vrsqrt.pop %v37
    %v40 = vmul.f32 %v23, %v38
    %v41 = vmul.f32 %v24, %v39
    %v42 = vpack.c.bf16 %v40, %v40
    %v43 = vpack.c.bf16 %v41, %v41
    %v44 = vmul.f32 %v25, %v25
    %v45 = vmul.f32 %v26, %v26
    %v46 = vsel %vm29, %v44, 0.0
    %47 = vadd.xlane.f32.xlu0 %v46
    %v48 = vpop.xlane.xlu0 %47
    %v49 = vsel %vm29, %v45, 0.0
    %50 = vadd.xlane.f32.xlu0 %v49
    %v51 = vpop.xlane.xlu0 %50
    %v52 = vmax.f32 %v48, 1e-24
    %v53 = vmax.f32 %v51, 1e-24
    %v54 = vrsqrt.pop %v52
    %v55 = vrsqrt.pop %v53
    %v56 = vmul.f32 %v25, %v54
    %v57 = vmul.f32 %v26, %v55
    %v58 = vpack.c.bf16 %v56, %v56
    %v59 = vpack.c.bf16 %v57, %v57
    %v61 = vsel %vm29, %v42, 0
    %v64 = vsel %vm29, %v58, 0
    %66 = vmatprep.subr.bf16.mxu0 0
    %67 = vmatpush1.bf16.xpose.msra.mxu0 0
    %68 = vmatprep.subr.bf16.mxu0 0
    %69 = vmatpush1.bf16.xpose.msra.mxu0 0
    %70 = vmatprep.subr.bf16.mxu0 0
    %71 = vmatpush1.bf16.xpose.msra.mxu0 0
    %72 = vmatprep.subr.bf16.mxu0 0
    %73 = vmatpush1.bf16.xpose.msra.mxu0 0
    %74 = vmatprep.subr.bf16.mxu0 0
    %75 = vmatpush1.bf16.xpose.msra.mxu0 0
    %76 = vmatprep.subr.bf16.mxu0 0
    %77 = vmatpush1.bf16.xpose.msra.mxu0 0
    %78 = vmatprep.subr.bf16.mxu0 0
    %79 = vmatpush1.bf16.xpose.msra.mxu0 0
    %80 = vmatprep.subr.bf16.mxu0 0
    %81 = vmatpush1.bf16.xpose.msra.mxu0 %v64
    %82 = vmatprep.subr.bf16.mxu0 0
    %83 = vmatpush2.bf16.xpose.msra.mxu0 0
    %84 = vmatprep.subr.bf16.mxu0 0
    %85 = vmatpush2.bf16.xpose.msra.mxu0 0
    %86 = vmatprep.subr.bf16.mxu0 0
    %87 = vmatpush2.bf16.xpose.msra.mxu0 0
    %88 = vmatprep.subr.bf16.mxu0 0
    %89 = vmatpush2.bf16.xpose.msra.mxu0 0
    %90 = vmatprep.subr.bf16.mxu0 0
    %91 = vmatpush2.bf16.xpose.msra.mxu0 0
    %92 = vmatprep.subr.bf16.mxu0 0
    %93 = vmatpush2.bf16.xpose.msra.mxu0 0
    %94 = vmatprep.subr.bf16.mxu0 0
    %95 = vmatpush2.bf16.xpose.msra.mxu0 0
    %96 = vmatprep.subr.bf16.mxu0 0
    %97 = vmatpush2.bf16.xpose.msra.mxu0 0
    %98 = vmatprep.mubr.bf16.mxu0 0
    %99 = vmatmul.mubr.bf16.gmra.mxu0 %v61
    %v100 = vpop.f32.mrf.mxu0
    %v101 = vadd.f32 0.0, %v100
    %v102 = vpop.f32.mrf.mxu0
    %v103 = vpop.f32.mrf.mxu0
    %v104 = vpop.f32.mrf.mxu0
    %105 = vdwg.mxu0
    %v107 = vsel %vm29, %v43, 0
    %v110 = vsel %vm29, %v59, 0
    %112 = vmatprep.subr.bf16.mxu0 0
    %113 = vmatpush1.bf16.xpose.msra.mxu0 0
    %114 = vmatprep.subr.bf16.mxu0 0
    %115 = vmatpush1.bf16.xpose.msra.mxu0 0
    %116 = vmatprep.subr.bf16.mxu0 0
    %117 = vmatpush1.bf16.xpose.msra.mxu0 0
    %118 = vmatprep.subr.bf16.mxu0 0
    %119 = vmatpush1.bf16.xpose.msra.mxu0 0
    %120 = vmatprep.subr.bf16.mxu0 0
    %121 = vmatpush1.bf16.xpose.msra.mxu0 0
    %122 = vmatprep.subr.bf16.mxu0 0
    %123 = vmatpush1.bf16.xpose.msra.mxu0 0
    %124 = vmatprep.subr.bf16.mxu0 0
    %125 = vmatpush1.bf16.xpose.msra.mxu0 0
    %126 = vmatprep.subr.bf16.mxu0 0
    %127 = vmatpush1.bf16.xpose.msra.mxu0 %v110
    %128 = vmatprep.subr.bf16.mxu0 0
    %129 = vmatpush2.bf16.xpose.msra.mxu0 0
    %130 = vmatprep.subr.bf16.mxu0 0
    %131 = vmatpush2.bf16.xpose.msra.mxu0 0
    %132 = vmatprep.subr.bf16.mxu0 0
    %133 = vmatpush2.bf16.xpose.msra.mxu0 0
    %134 = vmatprep.subr.bf16.mxu0 0
    %135 = vmatpush2.bf16.xpose.msra.mxu0 0
    %136 = vmatprep.subr.bf16.mxu0 0
    %137 = vmatpush2.bf16.xpose.msra.mxu0 0
    %138 = vmatprep.subr.bf16.mxu0 0
    %139 = vmatpush2.bf16.xpose.msra.mxu0 0
    %140 = vmatprep.subr.bf16.mxu0 0
    %141 = vmatpush2.bf16.xpose.msra.mxu0 0
    %142 = vmatprep.subr.bf16.mxu0 0
    %143 = vmatpush2.bf16.xpose.msra.mxu0 0
    %144 = vmatprep.mubr.bf16.mxu0 0
    %145 = vmatmul.mubr.bf16.gmra.mxu0 %v107
    %v146 = vpop.f32.mrf.mxu0
    %v147 = vadd.f32 0.0, %v146
    %v148 = vpop.f32.mrf.mxu0
    %v149 = vpop.f32.mrf.mxu0
    %v150 = vpop.f32.mrf.mxu0
    %151 = vdwg.mxu0
    %v152 = vsub.f32 1.0, %v101
    %v153 = vsub.f32 1.0, %v147
    %vm154 = vcmask 64512
    %155 = vst.msk [vmem:[#allocation2] sm:$0xff] %vm154, %v152
    %156 = vst.msk [vmem:[#allocation2 + $0x8] sm:$0xff] %vm154, %v153
    %v157 = vld [vmem:[%s2] sm:$0xff]
    %v158 = vld [vmem:[%s2 + $0x8] sm:$0xff]
    %v159 = vld [vmem:[%s2 + $0x10] sm:$0xff]
    %v160 = vld [vmem:[%s2 + $0x18] sm:$0xff]
    %v161 = vpack.c.bf16 %v158, %v157
    %v162 = vpack.c.bf16 %v160, %v159
    %v163 = vld [vmem:[%s3] sm:$0xff]
    %v164 = vld [vmem:[%s3 + $0x8] sm:$0xff]
    %v165 = vld [vmem:[%s3 + $0x10] sm:$0xff]
    %v166 = vld [vmem:[%s3 + $0x18] sm:$0xff]
    %v167 = vld [vmem:[%s3 + $0x20] sm:$0xff]
    %v168 = vld [vmem:[%s3 + $0x28] sm:$0xff]
    %v169 = vld [vmem:[%s3 + $0x30] sm:$0xff]
    %v170 = vld [vmem:[%s3 + $0x38] sm:$0xff]
    %v171 = vld [vmem:[%s3 + $0x40] sm:$0xff]
    %v172 = vld [vmem:[%s3 + $0x48] sm:$0xff]
    %v173 = vld [vmem:[%s3 + $0x50] sm:$0xff]
    %v174 = vld [vmem:[%s3 + $0x58] sm:$0xff]
    %v175 = vld [vmem:[%s3 + $0x60] sm:$0xff]
    %v176 = vld [vmem:[%s3 + $0x68] sm:$0xff]
    %v177 = vld [vmem:[%s3 + $0x70] sm:$0xff]
    %v178 = vld [vmem:[%s3 + $0x78] sm:$0xff]
    %v179 = vpack.c.bf16 %v164, %v163
    %v180 = vpack.c.bf16 %v166, %v165
    %v181 = vpack.c.bf16 %v168, %v167
    %v182 = vpack.c.bf16 %v170, %v169
    %v183 = vpack.c.bf16 %v172, %v171
    %v184 = vpack.c.bf16 %v174, %v173
    %v185 = vpack.c.bf16 %v176, %v175
    %v186 = vpack.c.bf16 %v178, %v177
    %v187 = vpack.c.bf16 %v24, %v23
    %v189 = vsel %vm29, %v187, 0
    %191 = vmatprep.subr.bf16.mxu0 0
    %192 = vmatpush1.bf16.msra.mxu0 0
    %193 = vmatprep.subr.bf16.mxu0 0
    %194 = vmatpush1.bf16.msra.mxu0 0
    %195 = vmatprep.subr.bf16.mxu0 0
    %196 = vmatpush1.bf16.msra.mxu0 0
    %197 = vmatprep.subr.bf16.mxu0 0
    %198 = vmatpush1.bf16.msra.mxu0 0
    %199 = vmatprep.subr.bf16.mxu0 0
    %200 = vmatpush1.bf16.msra.mxu0 0
    %201 = vmatprep.subr.bf16.mxu0 0
    %202 = vmatpush1.bf16.msra.mxu0 0
    %203 = vmatprep.subr.bf16.mxu0 0
    %204 = vmatpush1.bf16.msra.mxu0 %v162
    %205 = vmatprep.subr.bf16.mxu0 0
    %206 = vmatpush1.bf16.msra.mxu0 %v161
    %207 = vmatprep.subr.bf16.mxu0 0
    %208 = vmatpush2.bf16.msra.mxu0 0
    %209 = vmatprep.subr.bf16.mxu0 0
    %210 = vmatpush2.bf16.msra.mxu0 0
    %211 = vmatprep.subr.bf16.mxu0 0
    %212 = vmatpush2.bf16.msra.mxu0 0
    %213 = vmatprep.subr.bf16.mxu0 0
    %214 = vmatpush2.bf16.msra.mxu0 0
    %215 = vmatprep.subr.bf16.mxu0 0
    %216 = vmatpush2.bf16.msra.mxu0 0
    %217 = vmatprep.subr.bf16.mxu0 0
    %218 = vmatpush2.bf16.msra.mxu0 0
    %219 = vmatprep.subr.bf16.mxu0 0
    %220 = vmatpush2.bf16.msra.mxu0 0
    %221 = vmatprep.subr.bf16.mxu0 0
    %222 = vmatpush2.bf16.msra.mxu0 0
    %223 = vmatprep.mubr.bf16.mxu0 0
    %224 = vmatmul.mubr.bf16.gmra.mxu0 %v189
    %v225 = vpop.f32.mrf.mxu0
    %v226 = vadd.f32 0.0, %v225
    %v227 = vpop.f32.mrf.mxu0
    %v228 = vpop.f32.mrf.mxu0
    %v229 = vadd.f32 0.0, %v228
    %v230 = vpop.f32.mrf.mxu0
    %231 = vdwg.mxu0
    %v232 = vmax.f32 %v226, 0.0
    %v233 = vmax.f32 %v229, 0.0
    %v234 = vpack.c.bf16 %v233, %v232
    %235 = vmatprep.subr.bf16.mxu0 0
    %236 = vmatpush1.bf16.msra.mxu0 %v186
    %237 = vmatprep.subr.bf16.mxu0 0
    %238 = vmatpush1.bf16.msra.mxu0 %v185
    %239 = vmatprep.subr.bf16.mxu0 0
    %240 = vmatpush1.bf16.msra.mxu0 %v184
    %241 = vmatprep.subr.bf16.mxu0 0
    %242 = vmatpush1.bf16.msra.mxu0 %v183
    %243 = vmatprep.subr.bf16.mxu0 0
    %244 = vmatpush1.bf16.msra.mxu0 %v182
    %245 = vmatprep.subr.bf16.mxu0 0
    %246 = vmatpush1.bf16.msra.mxu0 %v181
    %247 = vmatprep.subr.bf16.mxu0 0
    %248 = vmatpush1.bf16.msra.mxu0 %v180
    %249 = vmatprep.subr.bf16.mxu0 0
    %250 = vmatpush1.bf16.msra.mxu0 %v179
    %251 = vmatprep.subr.bf16.mxu0 0
    %252 = vmatpush2.bf16.msra.mxu0 0
    %253 = vmatprep.subr.bf16.mxu0 0
    %254 = vmatpush2.bf16.msra.mxu0 0
    %255 = vmatprep.subr.bf16.mxu0 0
    %256 = vmatpush2.bf16.msra.mxu0 0
    %257 = vmatprep.subr.bf16.mxu0 0
    %258 = vmatpush2.bf16.msra.mxu0 0
    %259 = vmatprep.subr.bf16.mxu0 0
    %260 = vmatpush2.bf16.msra.mxu0 0
    %261 = vmatprep.subr.bf16.mxu0 0
    %262 = vmatpush2.bf16.msra.mxu0 0
    %263 = vmatprep.subr.bf16.mxu0 0
    %264 = vmatpush2.bf16.msra.mxu0 0
    %265 = vmatprep.subr.bf16.mxu0 0
    %266 = vmatpush2.bf16.msra.mxu0 0
    %267 = vmatprep.mubr.bf16.mxu0 0
    %268 = vmatmul.mubr.bf16.gmra.mxu0 %v234
    %v269 = vpop.f32.mrf.mxu0
    %v270 = vadd.f32 0.0, %v269
    %v271 = vpop.f32.mrf.mxu0
    %v272 = vpop.f32.mrf.mxu0
    %v273 = vadd.f32 0.0, %v272
    %v274 = vpop.f32.mrf.mxu0
    %275 = vdwg.mxu0
    %v276 = vmax.f32 %v270, 0.0
    %v277 = vmax.f32 %v273, 0.0
    %v278 = vadd.f32 %v23, %v276
    %v279 = vadd.f32 %v24, %v277
    %280 = vst.msk [vmem:[#allocation4] sm:$0xff] %vm29, %v278
    %281 = vst.msk [vmem:[#allocation4 + $0x8] sm:$0xff] %vm29, %v279
    %v282 = vpack.c.bf16 %v26, %v25
    %v284 = vsel %vm29, %v282, 0
    %286 = vmatprep.subr.bf16.mxu0 0
    %287 = vmatpush1.bf16.msra.mxu0 0
    %288 = vmatprep.subr.bf16.mxu0 0
    %289 = vmatpush1.bf16.msra.mxu0 0
    %290 = vmatprep.subr.bf16.mxu0 0
    %291 = vmatpush1.bf16.msra.mxu0 0
    %292 = vmatprep.subr.bf16.mxu0 0
    %293 = vmatpush1.bf16.msra.mxu0 0
    %294 = vmatprep.subr.bf16.mxu0 0
    %295 = vmatpush1.bf16.msra.mxu0 0
    %296 = vmatprep.subr.bf16.mxu0 0
    %297 = vmatpush1.bf16.msra.mxu0 0
    %298 = vmatprep.subr.bf16.mxu0 0
    %299 = vmatpush1.bf16.msra.mxu0 %v162
    %300 = vmatprep.subr.bf16.mxu0 0
    %301 = vmatpush1.bf16.msra.mxu0 %v161
    %302 = vmatprep.subr.bf16.mxu0 0
    %303 = vmatpush2.bf16.msra.mxu0 0
    %304 = vmatprep.subr.bf16.mxu0 0
    %305 = vmatpush2.bf16.msra.mxu0 0
    %306 = vmatprep.subr.bf16.mxu0 0
    %307 = vmatpush2.bf16.msra.mxu0 0
    %308 = vmatprep.subr.bf16.mxu0 0
    %309 = vmatpush2.bf16.msra.mxu0 0
    %310 = vmatprep.subr.bf16.mxu0 0
    %311 = vmatpush2.bf16.msra.mxu0 0
    %312 = vmatprep.subr.bf16.mxu0 0
    %313 = vmatpush2.bf16.msra.mxu0 0
    %314 = vmatprep.subr.bf16.mxu0 0
    %315 = vmatpush2.bf16.msra.mxu0 0
    %316 = vmatprep.subr.bf16.mxu0 0
    %317 = vmatpush2.bf16.msra.mxu0 0
    %318 = vmatprep.mubr.bf16.mxu0 0
    %319 = vmatmul.mubr.bf16.gmra.mxu0 %v284
    %v320 = vpop.f32.mrf.mxu0
    %v321 = vadd.f32 0.0, %v320
    %v322 = vpop.f32.mrf.mxu0
    %v323 = vpop.f32.mrf.mxu0
    %v324 = vadd.f32 0.0, %v323
    %v325 = vpop.f32.mrf.mxu0
    %326 = vdwg.mxu0
    %v327 = vmax.f32 %v321, 0.0
    %v328 = vmax.f32 %v324, 0.0
    %v329 = vpack.c.bf16 %v328, %v327
    %330 = vmatprep.subr.bf16.mxu0 0
    %331 = vmatpush1.bf16.msra.mxu0 %v186
    %332 = vmatprep.subr.bf16.mxu0 0
    %333 = vmatpush1.bf16.msra.mxu0 %v185
    %334 = vmatprep.subr.bf16.mxu0 0
    %335 = vmatpush1.bf16.msra.mxu0 %v184
    %336 = vmatprep.subr.bf16.mxu0 0
    %337 = vmatpush1.bf16.msra.mxu0 %v183
    %338 = vmatprep.subr.bf16.mxu0 0
    %339 = vmatpush1.bf16.msra.mxu0 %v182
    %340 = vmatprep.subr.bf16.mxu0 0
    %341 = vmatpush1.bf16.msra.mxu0 %v181
    %342 = vmatprep.subr.bf16.mxu0 0
    %343 = vmatpush1.bf16.msra.mxu0 %v180
    %344 = vmatprep.subr.bf16.mxu0 0
    %345 = vmatpush1.bf16.msra.mxu0 %v179
    %346 = vmatprep.subr.bf16.mxu0 0
    %347 = vmatpush2.bf16.msra.mxu0 0
    %348 = vmatprep.subr.bf16.mxu0 0
    %349 = vmatpush2.bf16.msra.mxu0 0
    %350 = vmatprep.subr.bf16.mxu0 0
    %351 = vmatpush2.bf16.msra.mxu0 0
    %352 = vmatprep.subr.bf16.mxu0 0
    %353 = vmatpush2.bf16.msra.mxu0 0
    %354 = vmatprep.subr.bf16.mxu0 0
    %355 = vmatpush2.bf16.msra.mxu0 0
    %356 = vmatprep.subr.bf16.mxu0 0
    %357 = vmatpush2.bf16.msra.mxu0 0
    %358 = vmatprep.subr.bf16.mxu0 0
    %359 = vmatpush2.bf16.msra.mxu0 0
    %360 = vmatprep.subr.bf16.mxu0 0
    %361 = vmatpush2.bf16.msra.mxu0 0
    %362 = vmatprep.mubr.bf16.mxu0 0
    %363 = vmatmul.mubr.bf16.gmra.mxu0 %v329
    %v364 = vpop.f32.mrf.mxu0
    %v365 = vadd.f32 0.0, %v364
    %v366 = vpop.f32.mrf.mxu0
    %v367 = vpop.f32.mrf.mxu0
    %v368 = vadd.f32 0.0, %v367
    %v369 = vpop.f32.mrf.mxu0
    %370 = vdwg.mxu0
    %v371 = vmax.f32 %v365, 0.0
    %v372 = vmax.f32 %v368, 0.0
    %v373 = vadd.f32 %v25, %v371
    %v374 = vadd.f32 %v26, %v372
    %375 = vst.msk [vmem:[#allocation6] sm:$0xff] %vm29, %v373
    %376 = vst.msk [vmem:[#allocation6 + $0x8] sm:$0xff] %vm29, %v374
    // Predicated region
    $region18: #{fused_cost_mlp_pallas.1} parent=1 // pred_check
      _
    $region19: #{fused_cost_mlp_pallas.1} parent=1 // pred_check_branch
      %378 = sbr.rel (0) target = $region21
    $region20: #{fused_cost_mlp_pallas.1} parent=1 // pred_region
      %s380 = ssub.s32 256, 256
      %381 = vsyncadd [#allocation3], %s380
      %s382 = sshll.u32 [#allocation2], 4
      %s383 = int_to_ptr.vmem [resolvable:$true] %s382
      %388 = dma.vmem_to_hbm [thread:$0]  %s383, 256, %s4, [#allocation3], 128, 128, 8
    $region21: #{fused_cost_mlp_pallas.1} parent=1 // pred_fallthru
      _
    // Predicated region
    $region22: #{fused_cost_mlp_pallas.1} parent=1 // pred_check
      _
    $region23: #{fused_cost_mlp_pallas.1} parent=1 // pred_check_branch
      %390 = sbr.rel (0) target = $region25
    $region24: #{fused_cost_mlp_pallas.1} parent=1 // pred_region
      %s392 = ssub.s32 256, 256
      %393 = vsyncadd [#allocation5], %s392
      %s394 = sshll.u32 [#allocation4], 4
      %s395 = int_to_ptr.vmem [resolvable:$true] %s394
      %400 = dma.vmem_to_hbm [thread:$0]  %s395, 256, %s5, [#allocation5], 128, 128, 8
    $region25: #{fused_cost_mlp_pallas.1} parent=1 // pred_fallthru
      _
    // Predicated region
    $region26: #{fused_cost_mlp_pallas.1} parent=1 // pred_check
      _
    $region27: #{fused_cost_mlp_pallas.1} parent=1 // pred_check_branch
      %402 = sbr.rel (0) target = $region29
    $region28: #{fused_cost_mlp_pallas.1} parent=1 // pred_region
      %s404 = ssub.s32 256, 256
      %405 = vsyncadd [#allocation5], %s404
      %s406 = sshll.u32 [#allocation6], 4
      %s407 = int_to_ptr.vmem [resolvable:$true] %s406
      %412 = dma.vmem_to_hbm [thread:$0]  %s407, 256, %s6, [#allocation5], 128, 128, 8
    $region29: #{fused_cost_mlp_pallas.1} parent=1 // pred_fallthru
      _
    // Predicated region
    $region30: #{fused_cost_mlp_pallas.1} parent=1 // pred_check
      _
    $region31: #{fused_cost_mlp_pallas.1} parent=1 // pred_check_branch
      %414 = sbr.rel (0) target = $region33
    $region32: #{fused_cost_mlp_pallas.1} parent=1 // pred_region
      %415 = dma.done [#allocation3], 256
    $region33: #{fused_cost_mlp_pallas.1} parent=1 // pred_fallthru
      _
    // Predicated region
    $region34: #{fused_cost_mlp_pallas.1} parent=1 // pred_check
      _
    $region35: #{fused_cost_mlp_pallas.1} parent=1 // pred_check_branch
      %417 = sbr.rel (0) target = $region37
    $region36: #{fused_cost_mlp_pallas.1} parent=1 // pred_region
      %418 = dma.done [#allocation5], 256
    $region37: #{fused_cost_mlp_pallas.1} parent=1 // pred_fallthru
      _
    // Predicated region
    $region38: #{fused_cost_mlp_pallas.1} parent=1 // pred_check
      _
    $region39: #{fused_cost_mlp_pallas.1} parent=1 // pred_check_branch
      %420 = sbr.rel (0) target = $region41
    $region40: #{fused_cost_mlp_pallas.1} parent=1 // pred_region
      %421 = dma.done [#allocation5], 256
    $region41: #{fused_cost_mlp_pallas.1} parent=1 // pred_fallthru
      _
    %422 = vsyncpa [#allocation3], 1
    %423 = vsyncpa [#allocation5], 1

</llo_original>
